<compile_context>
chip_gen: v7x
topology: tpu7x:2x2x1
jax: 0.10.0
libtpu: 0.0.40
codegen_flags: <defaults>
</compile_context>

<pallas_src>
import jax
import jax.numpy as jnp
from jax.experimental import pallas as pl
from jax.experimental.pallas import tpu as pltpu


def ffn_kernel(x_ref, w1_ref, b1_ref, w2_ref, b2_ref, o_ref, acc_ref):
    """One (row-tile, d_ff-tile) step of  y = relu(x @ W1 + b1) @ W2 + b2."""
    k = pl.program_id(1)                     # d_ff (reduction) axis, innermost
    nk = pl.num_programs(1)

    # First linear: bf16 operands on the MXU, f32 accumulation; bias + ReLU in f32.
    h = jnp.dot(x_ref[...], w1_ref[...], preferred_element_type=jnp.float32)
    h = jnp.maximum(h + b1_ref[...], 0.0)
    # TODO(synk): nn.Dropout is identity in eval mode; training-mode stochastic
    #             dropout (pltpu.prng_random_bits masking) is not applied here.

    # Second linear: partial product for this d_ff tile (bf16 MXU, f32 acc).
    part = jnp.dot(h.astype(w2_ref.dtype), w2_ref[...],
                   preferred_element_type=jnp.float32)

    @pl.when(k == 0)
    def _():
        first = part + b2_ref[...]           # fuse b2 into the first step

        @pl.when(k == nk - 1)                # single reduction step: write straight out
        def _():
            o_ref[...] = first.astype(o_ref.dtype)

        @pl.when(k < nk - 1)
        def _():
            acc_ref[...] = first

    @pl.when(k > 0)
    def _():
        total = acc_ref[...] + part

        @pl.when(k == nk - 1)                # last step: skip the acc round-trip
        def _():
            o_ref[...] = total.astype(o_ref.dtype)

        @pl.when(k < nk - 1)
        def _():
            acc_ref[...] = total


def _round_up(x, m):
    return ((x + m - 1) // m) * m


def _vmem_budget():
    """Usable VMEM budget with headroom for Mosaic internal scratch.

    ~48 MiB on v7x (64 MiB physical per TC), ~96 MiB on v5e/v6e (128 MiB physical).
    """
    cap = 64 * 1024 * 1024
    try:
        info = pltpu.get_tpu_info()
        cap = int(getattr(info, "vmem_capacity_bytes", cap))
    except Exception:
        pass
    return min((cap * 3) // 4, 100 * 1024 * 1024)


def _vmem_footprint(tm, tf, d_model, in_itm, out_itm):
    """Per-step VMEM footprint including double buffering and intermediates."""
    return (2 * tm * d_model * in_itm            # x tile (double-buffered)
            + 2 * tm * d_model * out_itm         # output tile (double-buffered)
            + 2 * 2 * d_model * tf * in_itm      # W1 + W2 tiles (double-buffered)
            + 2 * (tf + d_model) * 4             # b1 + b2 (f32, double-buffered)
            + tm * d_model * 4                   # f32 accumulator scratch
            + tm * tf * 4 + tm * tf * in_itm)    # h (f32) + bf16 copy for 2nd dot


def _pick_row_tile(m_pad8, target):
    """Largest multiple of 8 <= target dividing m_pad8 (avoids host padding),
    capped so the parallel row axis has >= 2 steps when possible (v7x megacore)."""
    cap = min(target, m_pad8)
    if m_pad8 >= 16:
        cap = min(cap, max(8, ((m_pad8 // 2) // 8) * 8))
    t = max(8, (cap // 8) * 8)
    while t > 8 and m_pad8 % t != 0:
        t -= 8
    return t


def _pick_ff_tile(d_ff, tm, d_model, in_itm, out_itm, budget, target=2048):
    """d_ff tile.  Prefer fully resident weights (tf == d_ff -> single k step),
    else the largest 128-aligned divisor of d_ff that fits, else pad d_ff."""
    def fits(tf):
        return _vmem_footprint(tm, tf, d_model, in_itm, out_itm) <= budget

    if fits(d_ff):
        return d_ff, d_ff                          # weights DMA'd once, stay resident
    t = (min(target, d_ff) // 128) * 128
    while t >= 128:
        if d_ff % t == 0 and fits(t):
            return t, d_ff
        t -= 128
    # Ragged / oversized d_ff: largest fitting 128-multiple, pad d_ff up to it.
    t = (min(target, d_ff) // 128) * 128
    while t > 128 and not fits(t):
        t -= 128
    t = max(t, 128)
    return t, _round_up(d_ff, t)


def positionwise_ffn(x, w1, b1, w2, b2, *, tm_target=512, use_bf16_matmul=True,
                     ff_tile_override=None):
    """Fused position-wise FFN:  relu(x @ W1 + b1) @ W2 + b2.

    x: (B, S, d_model); w1: (d_model, d_ff); b1: (d_ff,);
    w2: (d_ff, d_model); b2: (d_model,).
    """
    B, S, d_model = x.shape
    d_ff = w1.shape[1]
    M = B * S
    out_dtype = x.dtype

    mm_dtype = jnp.bfloat16 if use_bf16_matmul else x.dtype
    in_itm = jnp.dtype(mm_dtype).itemsize
    out_itm = jnp.dtype(out_dtype).itemsize
    budget = _vmem_budget()

    # ---- row tile ----
    M_pad8 = _round_up(M, 8)
    tm = _pick_row_tile(M_pad8, tm_target)
    if tm < min(128, M_pad8) and M_pad8 > 4 * tm_target:
        tm = tm_target                              # ragged M: pad rather than tiny tiles

    # ---- d_ff tile (prefer fully resident weights) ----
    if ff_tile_override is not None:
        tf = int(ff_tile_override)
        d_ff_pad = _round_up(d_ff, tf)
    else:
        tf, d_ff_pad = _pick_ff_tile(d_ff, tm, d_model, in_itm, out_itm, budget)
        while (_vmem_footprint(tm, tf, d_model, in_itm, out_itm) > budget
               and tm > 8):
            tm = max(8, ((tm // 2) // 8) * 8)
            tf, d_ff_pad = _pick_ff_tile(d_ff, tm, d_model, in_itm, out_itm, budget)

    M_pad = _round_up(M, tm)
    grid = (M_pad // tm, d_ff_pad // tf)            # reduction axis last

    # ---- operands: bf16 matmul inputs, f32 biases ----
    x2d = x.reshape(M, d_model)
    if M_pad != M:
        x2d = jnp.pad(x2d, ((0, M_pad - M), (0, 0)))
    x2d = x2d.astype(mm_dtype)
    w1_p = w1.astype(mm_dtype)
    w2_p = w2.astype(mm_dtype)
    b1_p = b1.astype(jnp.float32)
    b2_p = b2.astype(jnp.float32)
    if d_ff_pad != d_ff:
        p = d_ff_pad - d_ff
        w1_p = jnp.pad(w1_p, ((0, 0), (0, p)))      # zero cols -> relu(0)=0 contribution
        b1_p = jnp.pad(b1_p, (0, p))
        w2_p = jnp.pad(w2_p, ((0, p), (0, 0)))
    b1_2d = b1_p.reshape(1, d_ff_pad)
    b2_2d = b2_p.reshape(1, d_model)

    footprint = _vmem_footprint(tm, tf, d_model, in_itm, out_itm)
    vmem_limit = int(min(budget, max(footprint * 13 // 10, 32 * 1024 * 1024)))

    cost = pl.CostEstimate(
        flops=4 * M_pad * d_model * d_ff_pad,       # two matmuls
        transcendentals=0,
        bytes_accessed=(x2d.size * in_itm + w1_p.size * in_itm + w2_p.size * in_itm
                        + (b1_2d.size + b2_2d.size) * 4
                        + M_pad * d_model * out_itm))

    out = pl.pallas_call(
        ffn_kernel,
        out_shape=jax.ShapeDtypeStruct((M_pad, d_model), out_dtype),
        grid_spec=pltpu.PrefetchScalarGridSpec(
            num_scalar_prefetch=0,
            grid=grid,
            in_specs=[
                pl.BlockSpec((tm, d_model), lambda i, k: (i, 0)),   # x rows
                pl.BlockSpec((d_model, tf), lambda i, k: (0, k)),   # W1 tile
                pl.BlockSpec((1, tf), lambda i, k: (0, k)),         # b1 tile (f32)
                pl.BlockSpec((tf, d_model), lambda i, k: (k, 0)),   # W2 tile
                pl.BlockSpec((1, d_model), lambda i, k: (0, 0)),    # b2 (f32)
            ],
            out_specs=pl.BlockSpec((tm, d_model), lambda i, k: (i, 0)),
            scratch_shapes=[pltpu.VMEM((tm, d_model), jnp.float32)],
        ),
        compiler_params=pltpu.CompilerParams(
            dimension_semantics=("parallel", "arbitrary"),
            vmem_limit_bytes=vmem_limit),
        cost_estimate=cost,
    )(x2d, w1_p, b1_2d, w2_p, b2_2d)

    if M_pad != M:
        out = out[:M]
    return out.reshape(B, S, d_model)


def init_params(key, d_model, d_ff, dtype=jnp.float32):
    """Deterministic init mimicking PyTorch nn.Linear (uniform +-1/sqrt(fan_in)),
    stored transposed for right-multiplication inside the kernel."""
    k1, k2, k3, k4 = jax.random.split(key, 4)
    lim1 = 1.0 / (d_model ** 0.5)
    lim2 = 1.0 / (d_ff ** 0.5)
    w1 = jax.random.uniform(k1, (d_model, d_ff), dtype, -lim1, lim1)
    b1 = jax.random.uniform(k2, (d_ff,), dtype, -lim1, lim1)
    w2 = jax.random.uniform(k3, (d_ff, d_model), dtype, -lim2, lim2)
    b2 = jax.random.uniform(k4, (d_model,), dtype, -lim2, lim2)
    return w1, b1, w2, b2


if __name__ == "__main__":
    # Small but MXU-friendly shapes (d_model / d_ff multiples of 256).
    batch, seq, d_model, d_ff = 2, 8, 256, 512

    key = jax.random.PRNGKey(0)
    kx, kp = jax.random.split(key)
    x = jax.random.normal(kx, (batch, seq, d_model), jnp.float32)
    w1, b1, w2, b2 = init_params(kp, d_model, d_ff)

    ref = jnp.maximum(x @ w1 + b1, 0.0) @ w2 + b2

    # Main path: resident weights, single reduction step, 2 parallel row tiles.
    y = jax.block_until_ready(positionwise_ffn(x, w1, b1, w2, b2))
    assert y.shape == (batch, seq, d_model)
    err = float(jnp.max(jnp.abs(y - ref)))
    assert jnp.allclose(y, ref, atol=5e-2, rtol=5e-2), err

    # Multi-step reduction path (exercises the f32 VMEM accumulator + b2 fusion).
    y2 = jax.block_until_ready(
        positionwise_ffn(x, w1, b1, w2, b2, ff_tile_override=128))
    err2 = float(jnp.max(jnp.abs(y2 - ref)))
    assert jnp.allclose(y2, ref, atol=5e-2, rtol=5e-2), err2

    print("KERNEL_OK")
</pallas_src>

<mosaic_0001>
module attributes {stable_mosaic.version = 11 : i64} {
  func.func @ffn_kernel(%arg0: i32, %arg1: i32, %arg2: memref<8x256xbf16, #tpu.memory_space<vmem>>, %arg3: memref<256x512xbf16, #tpu.memory_space<vmem>>, %arg4: memref<1x512xf32, #tpu.memory_space<vmem>>, %arg5: memref<512x256xbf16, #tpu.memory_space<vmem>>, %arg6: memref<1x256xf32, #tpu.memory_space<vmem>>, %arg7: memref<8x256xf32, #tpu.memory_space<vmem>>, %arg8: memref<8x256xf32, #tpu.memory_space<vmem>>) attributes {dimension_semantics = [#tpu.dimension_semantics<parallel>, #tpu.dimension_semantics<arbitrary>], iteration_bounds = array<i64: 2, 1>, scalar_prefetch = 0 : i64, scratch_operands = 1 : i64, tpu.core_type = #tpu.core_type<tc>, window_params = [{transform_indices = @transform_0, window_bounds = array<i64: 8, 256>}, {transform_indices = @transform_1, window_bounds = array<i64: 256, 512>}, {transform_indices = @transform_2, window_bounds = array<i64: 1, 512>}, {transform_indices = @transform_3, window_bounds = array<i64: 512, 256>}, {pipeline_mode = #tpu.pipeline_mode<synchronous>, transform_indices = @transform_4, window_bounds = array<i64: 1, 256>}, {transform_indices = @transform_5, window_bounds = array<i64: 8, 256>}]} {
    %c0 = arith.constant 0 : index
    %c0_0 = arith.constant 0 : index
    %0 = vector.load %arg2[%c0, %c0_0] : memref<8x256xbf16, #tpu.memory_space<vmem>>, vector<8x256xbf16>
    %c0_1 = arith.constant 0 : index
    %c0_2 = arith.constant 0 : index
    %1 = vector.load %arg3[%c0_1, %c0_2] : memref<256x512xbf16, #tpu.memory_space<vmem>>, vector<256x512xbf16>
    %cst = arith.constant dense<0.000000e+00> : vector<8x512xf32>
    %2 = tpu.matmul %0, %1, %cst {dimension_numbers = #tpu.dot_dimension_numbers<[1], [0], [0], [1], [0, 0, 1, 1], [], []>} : vector<8x256xbf16>, vector<256x512xbf16>, vector<8x512xf32> -> vector<8x512xf32>
    %c0_3 = arith.constant 0 : index
    %c0_4 = arith.constant 0 : index
    %3 = vector.load %arg4[%c0_3, %c0_4] : memref<1x512xf32, #tpu.memory_space<vmem>>, vector<1x512xf32>
    %4 = vector.broadcast %3 : vector<1x512xf32> to vector<8x512xf32>
    %5 = arith.addf %2, %4 : vector<8x512xf32>
    %cst_5 = arith.constant 0.000000e+00 : f32
    %6 = vector.broadcast %cst_5 : f32 to vector<8x512xf32>
    %7 = arith.maximumf %5, %6 : vector<8x512xf32>
    %8 = arith.truncf %7 : vector<8x512xf32> to vector<8x512xbf16>
    %c0_6 = arith.constant 0 : index
    %c0_7 = arith.constant 0 : index
    %9 = vector.load %arg5[%c0_6, %c0_7] : memref<512x256xbf16, #tpu.memory_space<vmem>>, vector<512x256xbf16>
    %cst_8 = arith.constant dense<0.000000e+00> : vector<8x256xf32>
    %10 = tpu.matmul %8, %9, %cst_8 {dimension_numbers = #tpu.dot_dimension_numbers<[1], [0], [0], [1], [0, 0, 1, 1], [], []>} : vector<8x512xbf16>, vector<512x256xbf16>, vector<8x256xf32> -> vector<8x256xf32>
    %c0_i32 = arith.constant 0 : i32
    %11 = arith.cmpi eq, %arg1, %c0_i32 : i32
    %12 = arith.extui %11 : i1 to i32
    %c0_i32_9 = arith.constant 0 : i32
    %13 = arith.cmpi ne, %12, %c0_i32_9 : i32
    scf.if %13 {
      %c0_12 = arith.constant 0 : index
      %c0_13 = arith.constant 0 : index
      %17 = vector.load %arg6[%c0_12, %c0_13] : memref<1x256xf32, #tpu.memory_space<vmem>>, vector<1x256xf32>
      %18 = vector.broadcast %17 : vector<1x256xf32> to vector<8x256xf32>
      %19 = arith.addf %10, %18 : vector<8x256xf32>
      %c0_i32_14 = arith.constant 0 : i32
      %20 = arith.cmpi eq, %arg1, %c0_i32_14 : i32
      %21 = arith.extui %20 : i1 to i32
      %c0_i32_15 = arith.constant 0 : i32
      %22 = arith.cmpi ne, %21, %c0_i32_15 : i32
      scf.if %22 {
        %c0_18 = arith.constant 0 : index
        %c0_19 = arith.constant 0 : index
        %26 = vector.load %arg7[%c0_18, %c0_19] : memref<8x256xf32, #tpu.memory_space<vmem>>, vector<8x256xf32>
        tpu.vector_store %arg7[%c0_18, %c0_19], %19 {strides = array<i32>} : memref<8x256xf32, #tpu.memory_space<vmem>>, vector<8x256xf32>,
      } else {
      }
      %c0_i32_16 = arith.constant 0 : i32
      %23 = arith.cmpi slt, %arg1, %c0_i32_16 : i32
      %24 = arith.extui %23 : i1 to i32
      %c0_i32_17 = arith.constant 0 : i32
      %25 = arith.cmpi ne, %24, %c0_i32_17 : i32
      scf.if %25 {
        %c0_18 = arith.constant 0 : index
        %c0_19 = arith.constant 0 : index
        %26 = vector.load %arg8[%c0_18, %c0_19] : memref<8x256xf32, #tpu.memory_space<vmem>>, vector<8x256xf32>
        tpu.vector_store %arg8[%c0_18, %c0_19], %19 {strides = array<i32>} : memref<8x256xf32, #tpu.memory_space<vmem>>, vector<8x256xf32>,
      } else {
      }
    } else {
    }
    %c0_i32_10 = arith.constant 0 : i32
    %14 = arith.cmpi sgt, %arg1, %c0_i32_10 : i32
    %15 = arith.extui %14 : i1 to i32
    %c0_i32_11 = arith.constant 0 : i32
    %16 = arith.cmpi ne, %15, %c0_i32_11 : i32
    scf.if %16 {
      %c0_12 = arith.constant 0 : index
      %c0_13 = arith.constant 0 : index
      %17 = vector.load %arg8[%c0_12, %c0_13] : memref<8x256xf32, #tpu.memory_space<vmem>>, vector<8x256xf32>
      %18 = arith.addf %17, %10 : vector<8x256xf32>
      %c0_i32_14 = arith.constant 0 : i32
      %19 = arith.cmpi eq, %arg1, %c0_i32_14 : i32
      %20 = arith.extui %19 : i1 to i32
      %c0_i32_15 = arith.constant 0 : i32
      %21 = arith.cmpi ne, %20, %c0_i32_15 : i32
      scf.if %21 {
        %c0_18 = arith.constant 0 : index
        %c0_19 = arith.constant 0 : index
        %25 = vector.load %arg7[%c0_18, %c0_19] : memref<8x256xf32, #tpu.memory_space<vmem>>, vector<8x256xf32>
        tpu.vector_store %arg7[%c0_18, %c0_19], %18 {strides = array<i32>} : memref<8x256xf32, #tpu.memory_space<vmem>>, vector<8x256xf32>,
      } else {
      }
      %c0_i32_16 = arith.constant 0 : i32
      %22 = arith.cmpi slt, %arg1, %c0_i32_16 : i32
      %23 = arith.extui %22 : i1 to i32
      %c0_i32_17 = arith.constant 0 : i32
      %24 = arith.cmpi ne, %23, %c0_i32_17 : i32
      scf.if %24 {
        %c0_18 = arith.constant 0 : index
        %c0_19 = arith.constant 0 : index
        %25 = vector.load %arg8[%c0_18, %c0_19] : memref<8x256xf32, #tpu.memory_space<vmem>>, vector<8x256xf32>
        tpu.vector_store %arg8[%c0_18, %c0_19], %18 {strides = array<i32>} : memref<8x256xf32, #tpu.memory_space<vmem>>, vector<8x256xf32>,
      } else {
      }
    } else {
    }
    return
  }
  func.func @transform_0(%arg0: i32, %arg1: i32) -> (i32, i32) {
    %c0_i32 = arith.constant 0 : i32
    %c0_i32_0 = arith.constant 0 : i32
    return %arg0, %c0_i32 : i32, i32
  }
  func.func @transform_1(%arg0: i32, %arg1: i32) -> (i32, i32) {
    %c0_i32 = arith.constant 0 : i32
    %c0_i32_0 = arith.constant 0 : i32
    return %c0_i32, %arg1 : i32, i32
  }
  func.func @transform_2(%arg0: i32, %arg1: i32) -> (i32, i32) {
    %c0_i32 = arith.constant 0 : i32
    %c0_i32_0 = arith.constant 0 : i32
    return %c0_i32, %arg1 : i32, i32
  }
  func.func @transform_3(%arg0: i32, %arg1: i32) -> (i32, i32) {
    %c0_i32 = arith.constant 0 : i32
    %c0_i32_0 = arith.constant 0 : i32
    return %arg1, %c0_i32 : i32, i32
  }
  func.func @transform_4(%arg0: i32, %arg1: i32) -> (i32, i32) {
    %c0_i32 = arith.constant 0 : i32
    %c0_i32_0 = arith.constant 0 : i32
    %c0_i32_1 = arith.constant 0 : i32
    return %c0_i32, %c0_i32_0 : i32, i32
  }
  func.func @transform_5(%arg0: i32, %arg1: i32) -> (i32, i32) {
    %c0_i32 = arith.constant 0 : i32
    %c0_i32_0 = arith.constant 0 : i32
    return %arg0, %c0_i32 : i32, i32
  }
}

</mosaic_0001>

<llo_original>
// kernel: tpu_custom_call.1
$region0: #{tpu_custom_call.1}
  #allocation0 [shape = 'u32[]', space=smem, size = 0x4, offset = 0x4, fixed_abs, tag = 'smem constant byte address 0x4 - core index']
  #allocation1 [shape = 'u32[144,128]{1,0:T(1,128)}', space=vmem, size = 0x12000, scoped, tag = 'internal scratch']
  #allocation2 [shape = 'f32[8,256]{1,0:T(8,128)}', space=vmem, size = 0x2000, scoped, tag = 'scratch operand']
  %s0 = inlined_call_operand.hbm [shape: bf16[16,256], index: 0, kind: input, shape index: {}]
  %s1 = inlined_call_operand.hbm [shape: bf16[256,512], index: 1, kind: input, shape index: {}]
  %s2 = inlined_call_operand.vmem [shape: f32[1,512], index: 2, kind: input, shape index: {}]
  %s3 = inlined_call_operand.hbm [shape: bf16[512,256], index: 3, kind: input, shape index: {}]
  %s4 = inlined_call_operand.vmem [shape: f32[1,256], index: 4, kind: input, shape index: {}]
  %s5 = inlined_call_operand.hbm [shape: f32[16,256], index: 5, kind: output, shape index: {}]
  %s6 = sld [smem:[#allocation0]]
  $region85: #{tpu_custom_call.1} parent=0
    _
  %s8 = ssub.s32 1, %s6
  %s9 = scalar_select 0, %s8, %s6
  $region1: #{tpu_custom_call.1} parent=0
    #allocation3 [shape = 'u8[8192]{0}', space=vmem, size = 0x2000, scoped, tag = 'input window, operand 0']
    #allocation4 [shape = 's32[2]{0}', space=sflag, size = 0x8, scoped, tag = 'scoped memory for tpu_custom_call.1']
    #allocation5 [shape = 's32[2]{0}', space=sflag, size = 0x8, scoped, tag = 'scoped memory for tpu_custom_call.1']
    #allocation6 [shape = 'u8[262144]{0}', space=vmem, size = 0x40000, scoped, tag = 'input window, operand 1, single buffered']
    #allocation7 [shape = 's32[1]{0}', space=sflag, size = 0x4, scoped, tag = 'scoped memory for tpu_custom_call.1']
    #allocation8 [shape = 'u8[262144]{0}', space=vmem, size = 0x40000, scoped, tag = 'input window, operand 3, single buffered']
    #allocation9 [shape = 'u8[16384]{0}', space=vmem, size = 0x4000, scoped, tag = 'output window, operand 0']
    %10 = vsyncpa [#allocation4], 0
    %s11 = scalar_lea.sflag [#allocation4], 1
    %12 = vsyncpa %s11, 0
    %13 = vsyncpa [#allocation7], 0
    %14 = vsyncpa [#allocation5], 0
    %s15 = scalar_lea.sflag [#allocation5], 1
    %16 = vsyncpa %s15, 0
    loop: start=0, step=1, limit=4
    $region2: #{tpu_custom_call.1} parent=1 // loop_pre_header
      _
    $region3: #{tpu_custom_call.1} parent=1 // loop_header
      %s18 = sphi 0, %s22
      %p19 = scmp.ge.s32.totalorder %s18, 4
      %s25 = sphi 0, %s37
      %s26 = sphi 0, %s33
      %s27 = sphi 0, %s25
      %s28 = sphi 0, %s26
      %s29 = sphi 0, %s27
      %s30 = sphi 0, %s28
      %s40 = sphi 0, %s42
      %s43 = sphi 0, %s40
      %s44 = sphi 0, %s43
      %s60 = sphi 0, %s44
      %s66 = sphi 0, %s68
      %s69 = sphi 0, %s66
      %s70 = sphi 0, %s69
      %s86 = sphi 0, %s70
      %s92 = sphi 0, %s94
      %s95 = sphi 0, %s92
      %s96 = sphi 0, %s95
      %s112 = sphi 0, %s96
      %s118 = sphi 0, %s120
      %s121 = sphi 0, %s118
      %s122 = sphi 0, %s121
      %s138 = sphi 0, %s122
      %s142 = sphi 0, %s142
      %s144 = sphi 0, %s142
      %s145 = sphi 0, %s144
      %s159 = sphi 0, %s145
      %s165 = sphi 0, %s167
      %s168 = sphi 0, %s165
      %s169 = sphi 0, %s168
      %s185 = sphi 0, %s169
    $region4: #{tpu_custom_call.1} parent=1 // loop_header_branch
      %21 = sbr.rel (%p19) target = $region8
    $region5: #{tpu_custom_call.1} parent=1 // loop_body
      %s23 = ssub.s32 %s18, 1
      %s24 = ssub.s32 %s18, 2
      %s31 = sadd.s32 1, %s26
      %p32 = scmp.ge.s32.totalorder %s31, 1
      %s33 = scalar_select %p32, 0, %s31
      %s34 = sadd.s32 1, %s25
      %s35 = scalar_select %p32, %s34, %s25
      %p36 = scmp.ge.s32.totalorder %s35, 2
      %s37 = scalar_select %p36, 0, %s35
      %s38 = ssub.s32 %s25, %s37
      %p39 = scmp.eq.s32.totalorder %s38, 0
      %s41 = sadd.s32 %s40, 1
      %s42 = scalar_select %p39, %s40, %s41
      %p45 = pneg %p39
      %p46 = scmp.eq.s32.totalorder %s18, 1
      %p47 = por %p45, %p46
      %p48 = scmp.ne.s32.totalorder %s40, %s43
      %p49 = scmp.eq.s32.totalorder %s18, 0
      %p50 = por %p48, %p49
      %p51 = scmp.ne.s32.totalorder %s40, %s43
      %p52 = scmp.eq.s32.totalorder %s23, 1
      %p53 = por %p51, %p52
      %p54 = scmp.ne.s32.totalorder %s43, %s44
      %p55 = scmp.eq.s32.totalorder %s23, 0
      %p56 = por %p54, %p55
      %p57 = scmp.ne.s32.totalorder %s43, %s44
      %p58 = scmp.eq.s32.totalorder %s24, 1
      %p59 = por %p57, %p58
      %p61 = scmp.ne.s32.totalorder %s44, %s60
      %p62 = scmp.eq.s32.totalorder %s24, 0
      %p63 = por %p61, %p62
      %s64 = ssub.s32 %s26, %s33
      %p65 = scmp.eq.s32.totalorder %s64, 0
      %s67 = sadd.s32 %s66, 1
      %s68 = scalar_select %p65, %s66, %s67
      %p71 = pneg %p65
      %p72 = scmp.eq.s32.totalorder %s18, 1
      %p73 = por %p71, %p72
      %p74 = scmp.ne.s32.totalorder %s66, %s69
      %p75 = scmp.eq.s32.totalorder %s18, 0
      %p76 = por %p74, %p75
      %p77 = scmp.ne.s32.totalorder %s66, %s69
      %p78 = scmp.eq.s32.totalorder %s23, 1
      %p79 = por %p77, %p78
      %p80 = scmp.ne.s32.totalorder %s69, %s70
      %p81 = scmp.eq.s32.totalorder %s23, 0
      %p82 = por %p80, %p81
      %p83 = scmp.ne.s32.totalorder %s69, %s70
      %p84 = scmp.eq.s32.totalorder %s24, 1
      %p85 = por %p83, %p84
      %p87 = scmp.ne.s32.totalorder %s70, %s86
      %p88 = scmp.eq.s32.totalorder %s24, 0
      %p89 = por %p87, %p88
      %s90 = ssub.s32 %s26, %s33
      %p91 = scmp.eq.s32.totalorder %s90, 0
      %s93 = sadd.s32 %s92, 1
      %s94 = scalar_select %p91, %s92, %s93
      %p97 = pneg %p91
      %p98 = scmp.eq.s32.totalorder %s18, 1
      %p99 = por %p97, %p98
      %p100 = scmp.ne.s32.totalorder %s92, %s95
      %p101 = scmp.eq.s32.totalorder %s18, 0
      %p102 = por %p100, %p101
      %p103 = scmp.ne.s32.totalorder %s92, %s95
      %p104 = scmp.eq.s32.totalorder %s23, 1
      %p105 = por %p103, %p104
      %p106 = scmp.ne.s32.totalorder %s95, %s96
      %p107 = scmp.eq.s32.totalorder %s23, 0
      %p108 = por %p106, %p107
      %p109 = scmp.ne.s32.totalorder %s95, %s96
      %p110 = scmp.eq.s32.totalorder %s24, 1
      %p111 = por %p109, %p110
      %p113 = scmp.ne.s32.totalorder %s96, %s112
      %p114 = scmp.eq.s32.totalorder %s24, 0
      %p115 = por %p113, %p114
      %s116 = ssub.s32 %s26, %s33
      %p117 = scmp.eq.s32.totalorder %s116, 0
      %s119 = sadd.s32 %s118, 1
      %s120 = scalar_select %p117, %s118, %s119
      %p123 = pneg %p117
      %p124 = scmp.eq.s32.totalorder %s18, 1
      %p125 = por %p123, %p124
      %p126 = scmp.ne.s32.totalorder %s118, %s121
      %p127 = scmp.eq.s32.totalorder %s18, 0
      %p128 = por %p126, %p127
      %p129 = scmp.ne.s32.totalorder %s118, %s121
      %p130 = scmp.eq.s32.totalorder %s23, 1
      %p131 = por %p129, %p130
      %p132 = scmp.ne.s32.totalorder %s121, %s122
      %p133 = scmp.eq.s32.totalorder %s23, 0
      %p134 = por %p132, %p133
      %p135 = scmp.ne.s32.totalorder %s121, %s122
      %p136 = scmp.eq.s32.totalorder %s24, 1
      %p137 = por %p135, %p136
      %p139 = scmp.ne.s32.totalorder %s122, %s138
      %p140 = scmp.eq.s32.totalorder %s24, 0
      %p141 = por %p139, %p140
      %s143 = sadd.s32 %s142, 1
      %p146 = scmp.eq.s32.totalorder %s18, 1
      %p147 = scmp.ne.s32.totalorder %s142, %s144
      %p148 = scmp.eq.s32.totalorder %s18, 0
      %p149 = por %p147, %p148
      %p150 = scmp.ne.s32.totalorder %s142, %s144
      %p151 = scmp.eq.s32.totalorder %s23, 1
      %p152 = por %p150, %p151
      %p153 = scmp.ne.s32.totalorder %s144, %s145
      %p154 = scmp.eq.s32.totalorder %s23, 0
      %p155 = por %p153, %p154
      %p156 = scmp.ne.s32.totalorder %s144, %s145
      %p157 = scmp.eq.s32.totalorder %s24, 1
      %p158 = por %p156, %p157
      %p160 = scmp.ne.s32.totalorder %s145, %s159
      %p161 = scmp.eq.s32.totalorder %s24, 0
      %p162 = por %p160, %p161
      %s163 = ssub.s32 %s25, %s37
      %p164 = scmp.eq.s32.totalorder %s163, 0
      %s166 = sadd.s32 %s165, 1
      %s167 = scalar_select %p164, %s165, %s166
      %p170 = pneg %p164
      %p171 = scmp.eq.s32.totalorder %s18, 1
      %p172 = por %p170, %p171
      %p173 = scmp.ne.s32.totalorder %s165, %s168
      %p174 = scmp.eq.s32.totalorder %s18, 0
      %p175 = por %p173, %p174
      %p176 = scmp.ne.s32.totalorder %s165, %s168
      %p177 = scmp.eq.s32.totalorder %s23, 1
      %p178 = por %p176, %p177
      %p179 = scmp.ne.s32.totalorder %s168, %s169
      %p180 = scmp.eq.s32.totalorder %s23, 0
      %p181 = por %p179, %p180
      %p182 = scmp.ne.s32.totalorder %s168, %s169
      %p183 = scmp.eq.s32.totalorder %s24, 1
      %p184 = por %p182, %p183
      %p186 = scmp.ne.s32.totalorder %s169, %s185
      %p187 = scmp.eq.s32.totalorder %s24, 0
      %p188 = por %p186, %p187
      %p189 = scmp.le.s32.totalorder 1, %s18
      %p190 = scmp.lt.s32.totalorder %s18, 3
      %p191 = pnand %p189, %p190
      %p192 = pneg %p191
      // Predicated region
      $region9: #{tpu_custom_call.1} parent=5 // pred_check
        _
      $region10: #{tpu_custom_call.1} parent=5 // pred_check_branch
        %194 = sbr.rel (%p191) target = $region12
      $region11: #{tpu_custom_call.1} parent=5 // pred_region
        %s195 = ssub.s32 %s18, 1
        // Predicated region
        $region13: #{tpu_custom_call.1} parent=11 // pred_check
          %p196 = pneg %p82
        $region14: #{tpu_custom_call.1} parent=11 // pred_check_branch
          %198 = sbr.rel (%p196) target = $region16
        $region15: #{tpu_custom_call.1} parent=11 // pred_region
          %s199 = smul.u32 4, %s28
          %s201 = ssub.s32 8192, 8192
          %202 = vsyncadd [#allocation7], %s201
          %s203 = smul.addr %s199, 64
          %s204 = scalar_lea.hbm %s1, %s203
          %s205 = sshll.u32 [#allocation6], 4
          %s206 = int_to_ptr.vmem [resolvable:$true] %s205
          %211 = dma.hbm_to_vmem [thread:$0]  %s204, 8192, %s206, [#allocation7], 256, 256, 16
        $region16: #{tpu_custom_call.1} parent=11 // pred_fallthru
          _
        // Predicated region
        $region17: #{tpu_custom_call.1} parent=11 // pred_check
          %p212 = pneg %p108
        $region18: #{tpu_custom_call.1} parent=11 // pred_check_branch
          %214 = sbr.rel (%p212) target = $region20
        $region19: #{tpu_custom_call.1} parent=11 // pred_region
          %s215 = smul.u32 4, %s28
          %p216 = scmp.lt.s32.totalorder %s215, 3
          %s217 = scalar_select %p216, %s215, 3
          %s218 = scalar_lea.vmem %s2, %s217
          %s219 = smul.u32 4, %s28
        $region20: #{tpu_custom_call.1} parent=11 // pred_fallthru
          _
        // Predicated region
        $region21: #{tpu_custom_call.1} parent=11 // pred_check
          %p220 = pneg %p134
        $region22: #{tpu_custom_call.1} parent=11 // pred_check_branch
          %222 = sbr.rel (%p220) target = $region24
        $region23: #{tpu_custom_call.1} parent=11 // pred_region
          %s223 = smul.u32 64, %s28
          %s225 = ssub.s32 8192, 8192
          %226 = vsyncadd [#allocation7], %s225
          %s227 = smul.addr %s223, 2
          %s228 = smul.addr %s227, 64
          %s229 = scalar_lea.hbm %s3, %s228
          %s230 = sshll.u32 [#allocation8], 4
          %s231 = int_to_ptr.vmem [resolvable:$true] %s230
          %236 = dma.hbm_to_vmem [thread:$0]  %s229, 8192, %s231, [#allocation7], 128, 128, 8
        $region24: #{tpu_custom_call.1} parent=11 // pred_fallthru
          _
        // Predicated region
        $region25: #{tpu_custom_call.1} parent=11 // pred_check
          %p237 = pneg %p155
        $region26: #{tpu_custom_call.1} parent=11 // pred_check_branch
          %239 = sbr.rel (%p237) target = $region28
        $region27: #{tpu_custom_call.1} parent=11 // pred_region
          _
        $region28: #{tpu_custom_call.1} parent=11 // pred_fallthru
          _
      $region12: #{tpu_custom_call.1} parent=5 // pred_fallthru
        _
      %p240 = scmp.lt.s32.totalorder %s18, 2
      // Predicated region
      $region29: #{tpu_custom_call.1} parent=5 // pred_check
        %p241 = pneg %p240
      $region30: #{tpu_custom_call.1} parent=5 // pred_check_branch
        %243 = sbr.rel (%p241) target = $region32
      $region31: #{tpu_custom_call.1} parent=5 // pred_region
        // Predicated region
        $region33: #{tpu_custom_call.1} parent=31 // pred_check
          %p244 = pneg %p50
        $region34: #{tpu_custom_call.1} parent=31 // pred_check_branch
          %246 = sbr.rel (%p244) target = $region36
        $region35: #{tpu_custom_call.1} parent=31 // pred_region
          %s247 = sand.u32 %s40, 1
          %s248 = scalar_lea.sflag [#allocation4], %s247
          %s249 = sand.u32 %s40, 1
          %s250 = smul.addr %s249, 8
          %s251 = scalar_lea.vmem [#allocation3], %s250
          %s253 = ssub.s32 128, 128
          %254 = vsyncadd %s248, %s253
          %s255 = smul.addr %s25, 2
          %s256 = smul.addr %s255, 64
          %s257 = scalar_lea.hbm %s0, %s256
          %s259 = sshll.u32 %s251, 4
          %s260 = int_to_ptr.vmem [resolvable:$true] %s259
          %262 = dma.hbm_to_vmem [thread:$0]  %s257, 128, %s260, %s248
        $region36: #{tpu_custom_call.1} parent=31 // pred_fallthru
          _
      $region32: #{tpu_custom_call.1} parent=5 // pred_fallthru
        _
      %p263 = scmp.le.s32.totalorder 1, %s18
      %p264 = scmp.lt.s32.totalorder %s18, 3
      %p265 = pnand %p263, %p264
      %p266 = pneg %p265
      // Predicated region
      $region37: #{tpu_custom_call.1} parent=5 // pred_check
        _
      $region38: #{tpu_custom_call.1} parent=5 // pred_check_branch
        %268 = sbr.rel (%p265) target = $region40
      $region39: #{tpu_custom_call.1} parent=5 // pred_region
        %s269 = ssub.s32 %s18, 1
        %s270 = sand.u32 %s43, 1
        %s271 = scalar_lea.sflag [#allocation4], %s270
        %s272 = sand.u32 %s43, 1
        %s273 = smul.addr %s272, 8
        %s274 = scalar_lea.vmem [#allocation3], %s273
        // Predicated region
        $region41: #{tpu_custom_call.1} parent=39 // pred_check
          %p275 = pneg %p56
        $region42: #{tpu_custom_call.1} parent=39 // pred_check_branch
          %277 = sbr.rel (%p275) target = $region44
        $region43: #{tpu_custom_call.1} parent=39 // pred_region
          %278 = dma.done %s271, 128
        $region44: #{tpu_custom_call.1} parent=39 // pred_fallthru
          _
        // Predicated region
        $region45: #{tpu_custom_call.1} parent=39 // pred_check
          %p279 = pneg %p82
        $region46: #{tpu_custom_call.1} parent=39 // pred_check_branch
          %281 = sbr.rel (%p279) target = $region48
        $region47: #{tpu_custom_call.1} parent=39 // pred_region
          %282 = dma.done [#allocation7], 8192
        $region48: #{tpu_custom_call.1} parent=39 // pred_fallthru
          _
        // Predicated region
        $region49: #{tpu_custom_call.1} parent=39 // pred_check
          %p283 = pneg %p134
        $region50: #{tpu_custom_call.1} parent=39 // pred_check_branch
          %285 = sbr.rel (%p283) target = $region52
        $region51: #{tpu_custom_call.1} parent=39 // pred_region
          %286 = dma.done [#allocation7], 8192
        $region52: #{tpu_custom_call.1} parent=39 // pred_fallthru
          _
        %s287 = sand.u32 %s43, 1
        %s288 = scalar_lea.sflag [#allocation4], %s287
        %s289 = sand.u32 %s43, 1
        %s290 = smul.addr %s289, 8
        %s291 = scalar_lea.vmem [#allocation3], %s290
        %p292 = pneg %p56
        %p293 = pneg %p53
        %p294 = pneg %p82
        %p295 = pneg %p79
        %s296 = smul.u32 4, %s28
        %p297 = scmp.lt.s32.totalorder %s296, 3
        %s298 = scalar_select %p297, %s296, 3
        %s299 = scalar_lea.vmem %s2, %s298
        %p300 = pneg %p108
        %p301 = pneg %p105
        %p302 = pneg %p134
        %p303 = pneg %p131
        %p304 = pneg %p155
        %p305 = pneg %p152
        %p306 = pneg %p181
        %p307 = pneg %p178
        %s308 = sand.u32 %s168, 1
        %s309 = scalar_lea.sflag [#allocation5], %s308
        %s310 = sand.u32 %s168, 1
        %s311 = smul.addr %s310, 16
        %s312 = scalar_lea.vmem [#allocation9], %s311
        %s313 = smul.u32 4, %s28
        %s314 = smul.u32 4, %s28
        %p315 = scmp.lt.s32.totalorder %s314, 3
        %s316 = scalar_select %p315, %s314, 3
        %s317 = scalar_lea.vmem %s2, %s316
        %s318 = smul.u32 4, %s28
        %s319 = smul.u32 64, %s28
        %v320 = vld [vmem:[%s274] sm:$0xff]
        %v321 = vld [vmem:[#allocation6] sm:$0xff]
        %v322 = vld [vmem:[#allocation6 + $0x8] sm:$0xff]
        %v323 = vld [vmem:[#allocation6 + $0x10] sm:$0xff]
        %v324 = vld [vmem:[#allocation6 + $0x18] sm:$0xff]
        %v325 = vld [vmem:[#allocation6 + $0x20] sm:$0xff]
        %v326 = vld [vmem:[#allocation6 + $0x28] sm:$0xff]
        %v327 = vld [vmem:[#allocation6 + $0x30] sm:$0xff]
        %v328 = vld [vmem:[#allocation6 + $0x38] sm:$0xff]
        %v329 = vld [vmem:[#allocation6 + $0x40] sm:$0xff]
        %v330 = vld [vmem:[#allocation6 + $0x48] sm:$0xff]
        %v331 = vld [vmem:[#allocation6 + $0x50] sm:$0xff]
        %v332 = vld [vmem:[#allocation6 + $0x58] sm:$0xff]
        %v333 = vld [vmem:[#allocation6 + $0x60] sm:$0xff]
        %v334 = vld [vmem:[#allocation6 + $0x68] sm:$0xff]
        %v335 = vld [vmem:[#allocation6 + $0x70] sm:$0xff]
        %v336 = vld [vmem:[#allocation6 + $0x78] sm:$0xff]
        %v337 = vld [vmem:[#allocation6 + $0x80] sm:$0xff]
        %v338 = vld [vmem:[#allocation6 + $0x88] sm:$0xff]
        %v339 = vld [vmem:[#allocation6 + $0x90] sm:$0xff]
        %v340 = vld [vmem:[#allocation6 + $0x98] sm:$0xff]
        %v341 = vld [vmem:[#allocation6 + $0xa0] sm:$0xff]
        %v342 = vld [vmem:[#allocation6 + $0xa8] sm:$0xff]
        %v343 = vld [vmem:[#allocation6 + $0xb0] sm:$0xff]
        %v344 = vld [vmem:[#allocation6 + $0xb8] sm:$0xff]
        %v345 = vld [vmem:[#allocation6 + $0xc0] sm:$0xff]
        %v346 = vld [vmem:[#allocation6 + $0xc8] sm:$0xff]
        %v347 = vld [vmem:[#allocation6 + $0xd0] sm:$0xff]
        %v348 = vld [vmem:[#allocation6 + $0xd8] sm:$0xff]
        %v349 = vld [vmem:[#allocation6 + $0xe0] sm:$0xff]
        %v350 = vld [vmem:[#allocation6 + $0xe8] sm:$0xff]
        %v351 = vld [vmem:[#allocation6 + $0xf0] sm:$0xff]
        %v352 = vld [vmem:[#allocation6 + $0xf8] sm:$0xff]
        %v353 = vld [vmem:[#allocation6 + $0x100] sm:$0xff]
        %v354 = vld [vmem:[#allocation6 + $0x108] sm:$0xff]
        %v355 = vld [vmem:[#allocation6 + $0x110] sm:$0xff]
        %v356 = vld [vmem:[#allocation6 + $0x118] sm:$0xff]
        %v357 = vld [vmem:[#allocation6 + $0x120] sm:$0xff]
        %v358 = vld [vmem:[#allocation6 + $0x128] sm:$0xff]
        %v359 = vld [vmem:[#allocation6 + $0x130] sm:$0xff]
        %v360 = vld [vmem:[#allocation6 + $0x138] sm:$0xff]
        %v361 = vld [vmem:[#allocation6 + $0x140] sm:$0xff]
        %v362 = vld [vmem:[#allocation6 + $0x148] sm:$0xff]
        %v363 = vld [vmem:[#allocation6 + $0x150] sm:$0xff]
        %v364 = vld [vmem:[#allocation6 + $0x158] sm:$0xff]
        %v365 = vld [vmem:[#allocation6 + $0x160] sm:$0xff]
        %v366 = vld [vmem:[#allocation6 + $0x168] sm:$0xff]
        %v367 = vld [vmem:[#allocation6 + $0x170] sm:$0xff]
        %v368 = vld [vmem:[#allocation6 + $0x178] sm:$0xff]
        %v369 = vld [vmem:[#allocation6 + $0x180] sm:$0xff]
        %v370 = vld [vmem:[#allocation6 + $0x188] sm:$0xff]
        %v371 = vld [vmem:[#allocation6 + $0x190] sm:$0xff]
        %v372 = vld [vmem:[#allocation6 + $0x198] sm:$0xff]
        %v373 = vld [vmem:[#allocation6 + $0x1a0] sm:$0xff]
        %v374 = vld [vmem:[#allocation6 + $0x1a8] sm:$0xff]
        %v375 = vld [vmem:[#allocation6 + $0x1b0] sm:$0xff]
        %v376 = vld [vmem:[#allocation6 + $0x1b8] sm:$0xff]
        %v377 = vld [vmem:[#allocation6 + $0x1c0] sm:$0xff]
        %v378 = vld [vmem:[#allocation6 + $0x1c8] sm:$0xff]
        %v379 = vld [vmem:[#allocation6 + $0x1d0] sm:$0xff]
        %v380 = vld [vmem:[#allocation6 + $0x1d8] sm:$0xff]
        %v381 = vld [vmem:[#allocation6 + $0x1e0] sm:$0xff]
        %v382 = vld [vmem:[#allocation6 + $0x1e8] sm:$0xff]
        %v383 = vld [vmem:[#allocation6 + $0x1f0] sm:$0xff]
        %v384 = vld [vmem:[#allocation6 + $0x1f8] sm:$0xff]
        %v385 = vld [vmem:[%s317] sm:$0xf]
        %v387 = vlaneseq
        %v388 = vshrl.u32 %v387, 7
        %v389 = vsub.s32 0, %v388
        %v390 = vrot.slane %v385, %v389
        %v391 = vlaneseq
        %v392 = vshrl.u32 %v391, 7
        %v393 = vsub.s32 1, %v392
        %v394 = vrot.slane %v385, %v393
        %v395 = vlaneseq
        %v396 = vshrl.u32 %v395, 7
        %v397 = vsub.s32 2, %v396
        %v398 = vrot.slane %v385, %v397
        %v399 = vlaneseq
        %v400 = vshrl.u32 %v399, 7
        %v401 = vsub.s32 3, %v400
        %v402 = vrot.slane %v385, %v401
        %v408 = vunpack.c.l.b16 %v320
        %v409 = vunpack.c.h.b16 %v320
        %v410 = vpack.c.b16 %v408, %v408
        %v411 = vpack.c.b16 %v409, %v409
        %v478 = vunpack.c.l.b16 %v321
        %v479 = vunpack.c.h.b16 %v321
        %v480 = vunpack.c.l.b16 %v322
        %v481 = vunpack.c.h.b16 %v322
        %v482 = vunpack.c.l.b16 %v323
        %v483 = vunpack.c.h.b16 %v323
        %v484 = vunpack.c.l.b16 %v324
        %v485 = vunpack.c.h.b16 %v324
        %v486 = vunpack.c.l.b16 %v325
        %v487 = vunpack.c.h.b16 %v325
        %v488 = vunpack.c.l.b16 %v326
        %v489 = vunpack.c.h.b16 %v326
        %v490 = vunpack.c.l.b16 %v327
        %v491 = vunpack.c.h.b16 %v327
        %v492 = vunpack.c.l.b16 %v328
        %v493 = vunpack.c.h.b16 %v328
        %v494 = vunpack.c.l.b16 %v329
        %v495 = vunpack.c.h.b16 %v329
        %v496 = vunpack.c.l.b16 %v330
        %v497 = vunpack.c.h.b16 %v330
        %v498 = vunpack.c.l.b16 %v331
        %v499 = vunpack.c.h.b16 %v331
        %v500 = vunpack.c.l.b16 %v332
        %v501 = vunpack.c.h.b16 %v332
        %v502 = vunpack.c.l.b16 %v333
        %v503 = vunpack.c.h.b16 %v333
        %v504 = vunpack.c.l.b16 %v334
        %v505 = vunpack.c.h.b16 %v334
        %v506 = vunpack.c.l.b16 %v335
        %v507 = vunpack.c.h.b16 %v335
        %v508 = vunpack.c.l.b16 %v336
        %v509 = vunpack.c.h.b16 %v336
        %v510 = vunpack.c.l.b16 %v337
        %v511 = vunpack.c.h.b16 %v337
        %v512 = vunpack.c.l.b16 %v338
        %v513 = vunpack.c.h.b16 %v338
        %v514 = vunpack.c.l.b16 %v339
        %v515 = vunpack.c.h.b16 %v339
        %v516 = vunpack.c.l.b16 %v340
        %v517 = vunpack.c.h.b16 %v340
        %v518 = vunpack.c.l.b16 %v341
        %v519 = vunpack.c.h.b16 %v341
        %v520 = vunpack.c.l.b16 %v342
        %v521 = vunpack.c.h.b16 %v342
        %v522 = vunpack.c.l.b16 %v343
        %v523 = vunpack.c.h.b16 %v343
        %v524 = vunpack.c.l.b16 %v344
        %v525 = vunpack.c.h.b16 %v344
        %v526 = vunpack.c.l.b16 %v345
        %v527 = vunpack.c.h.b16 %v345
        %v528 = vunpack.c.l.b16 %v346
        %v529 = vunpack.c.h.b16 %v346
        %v530 = vunpack.c.l.b16 %v347
        %v531 = vunpack.c.h.b16 %v347
        %v532 = vunpack.c.l.b16 %v348
        %v533 = vunpack.c.h.b16 %v348
        %v534 = vunpack.c.l.b16 %v349
        %v535 = vunpack.c.h.b16 %v349
        %v536 = vunpack.c.l.b16 %v350
        %v537 = vunpack.c.h.b16 %v350
        %v538 = vunpack.c.l.b16 %v351
        %v539 = vunpack.c.h.b16 %v351
        %v540 = vunpack.c.l.b16 %v352
        %v541 = vunpack.c.h.b16 %v352
        %v542 = vunpack.c.l.b16 %v353
        %v543 = vunpack.c.h.b16 %v353
        %v544 = vunpack.c.l.b16 %v354
        %v545 = vunpack.c.h.b16 %v354
        %v546 = vunpack.c.l.b16 %v355
        %v547 = vunpack.c.h.b16 %v355
        %v548 = vunpack.c.l.b16 %v356
        %v549 = vunpack.c.h.b16 %v356
        %v550 = vunpack.c.l.b16 %v357
        %v551 = vunpack.c.h.b16 %v357
        %v552 = vunpack.c.l.b16 %v358
        %v553 = vunpack.c.h.b16 %v358
        %v554 = vunpack.c.l.b16 %v359
        %v555 = vunpack.c.h.b16 %v359
        %v556 = vunpack.c.l.b16 %v360
        %v557 = vunpack.c.h.b16 %v360
        %v558 = vunpack.c.l.b16 %v361
        %v559 = vunpack.c.h.b16 %v361
        %v560 = vunpack.c.l.b16 %v362
        %v561 = vunpack.c.h.b16 %v362
        %v562 = vunpack.c.l.b16 %v363
        %v563 = vunpack.c.h.b16 %v363
        %v564 = vunpack.c.l.b16 %v364
        %v565 = vunpack.c.h.b16 %v364
        %v566 = vunpack.c.l.b16 %v365
        %v567 = vunpack.c.h.b16 %v365
        %v568 = vunpack.c.l.b16 %v366
        %v569 = vunpack.c.h.b16 %v366
        %v570 = vunpack.c.l.b16 %v367
        %v571 = vunpack.c.h.b16 %v367
        %v572 = vunpack.c.l.b16 %v368
        %v573 = vunpack.c.h.b16 %v368
        %v574 = vunpack.c.l.b16 %v369
        %v575 = vunpack.c.h.b16 %v369
        %v576 = vunpack.c.l.b16 %v370
        %v577 = vunpack.c.h.b16 %v370
        %v578 = vunpack.c.l.b16 %v371
        %v579 = vunpack.c.h.b16 %v371
        %v580 = vunpack.c.l.b16 %v372
        %v581 = vunpack.c.h.b16 %v372
        %v582 = vunpack.c.l.b16 %v373
        %v583 = vunpack.c.h.b16 %v373
        %v584 = vunpack.c.l.b16 %v374
        %v585 = vunpack.c.h.b16 %v374
        %v586 = vunpack.c.l.b16 %v375
        %v587 = vunpack.c.h.b16 %v375
        %v588 = vunpack.c.l.b16 %v376
        %v589 = vunpack.c.h.b16 %v376
        %v590 = vunpack.c.l.b16 %v377
        %v591 = vunpack.c.h.b16 %v377
        %v592 = vunpack.c.l.b16 %v378
        %v593 = vunpack.c.h.b16 %v378
        %v594 = vunpack.c.l.b16 %v379
        %v595 = vunpack.c.h.b16 %v379
        %v596 = vunpack.c.l.b16 %v380
        %v597 = vunpack.c.h.b16 %v380
        %v598 = vunpack.c.l.b16 %v381
        %v599 = vunpack.c.h.b16 %v381
        %v600 = vunpack.c.l.b16 %v382
        %v601 = vunpack.c.h.b16 %v382
        %v602 = vunpack.c.l.b16 %v383
        %v603 = vunpack.c.h.b16 %v383
        %v604 = vunpack.c.l.b16 %v384
        %v605 = vunpack.c.h.b16 %v384
        %v606 = vpack.c.b16 %v482, %v478
        %v607 = vpack.c.b16 %v483, %v479
        %v608 = vpack.c.b16 %v484, %v480
        %v609 = vpack.c.b16 %v485, %v481
        %v610 = vpack.c.b16 %v490, %v486
        %v611 = vpack.c.b16 %v491, %v487
        %v612 = vpack.c.b16 %v492, %v488
        %v613 = vpack.c.b16 %v493, %v489
        %v614 = vpack.c.b16 %v498, %v494
        %v615 = vpack.c.b16 %v499, %v495
        %v616 = vpack.c.b16 %v500, %v496
        %v617 = vpack.c.b16 %v501, %v497
        %v618 = vpack.c.b16 %v506, %v502
        %v619 = vpack.c.b16 %v507, %v503
        %v620 = vpack.c.b16 %v508, %v504
        %v621 = vpack.c.b16 %v509, %v505
        %v622 = vpack.c.b16 %v514, %v510
        %v623 = vpack.c.b16 %v515, %v511
        %v624 = vpack.c.b16 %v516, %v512
        %v625 = vpack.c.b16 %v517, %v513
        %v626 = vpack.c.b16 %v522, %v518
        %v627 = vpack.c.b16 %v523, %v519
        %v628 = vpack.c.b16 %v524, %v520
        %v629 = vpack.c.b16 %v525, %v521
        %v630 = vpack.c.b16 %v530, %v526
        %v631 = vpack.c.b16 %v531, %v527
        %v632 = vpack.c.b16 %v532, %v528
        %v633 = vpack.c.b16 %v533, %v529
        %v634 = vpack.c.b16 %v538, %v534
        %v635 = vpack.c.b16 %v539, %v535
        %v636 = vpack.c.b16 %v540, %v536
        %v637 = vpack.c.b16 %v541, %v537
        %v638 = vpack.c.b16 %v546, %v542
        %v639 = vpack.c.b16 %v547, %v543
        %v640 = vpack.c.b16 %v548, %v544
        %v641 = vpack.c.b16 %v549, %v545
        %v642 = vpack.c.b16 %v554, %v550
        %v643 = vpack.c.b16 %v555, %v551
        %v644 = vpack.c.b16 %v556, %v552
        %v645 = vpack.c.b16 %v557, %v553
        %v646 = vpack.c.b16 %v562, %v558
        %v647 = vpack.c.b16 %v563, %v559
        %v648 = vpack.c.b16 %v564, %v560
        %v649 = vpack.c.b16 %v565, %v561
        %v650 = vpack.c.b16 %v570, %v566
        %v651 = vpack.c.b16 %v571, %v567
        %v652 = vpack.c.b16 %v572, %v568
        %v653 = vpack.c.b16 %v573, %v569
        %v654 = vpack.c.b16 %v578, %v574
        %v655 = vpack.c.b16 %v579, %v575
        %v656 = vpack.c.b16 %v580, %v576
        %v657 = vpack.c.b16 %v581, %v577
        %v658 = vpack.c.b16 %v586, %v582
        %v659 = vpack.c.b16 %v587, %v583
        %v660 = vpack.c.b16 %v588, %v584
        %v661 = vpack.c.b16 %v589, %v585
        %v662 = vpack.c.b16 %v594, %v590
        %v663 = vpack.c.b16 %v595, %v591
        %v664 = vpack.c.b16 %v596, %v592
        %v665 = vpack.c.b16 %v597, %v593
        %v666 = vpack.c.b16 %v602, %v598
        %v667 = vpack.c.b16 %v603, %v599
        %v668 = vpack.c.b16 %v604, %v600
        %v669 = vpack.c.b16 %v605, %v601
        %734 = vmatprep.subr.bf16.mxu0 %v607
        %735 = vmatpush1.bf16.msra.mxu0 %v606
        %736 = vmatprep.subr.bf16.mxu0 %v611
        %737 = vmatpush1.bf16.msra.mxu0 %v610
        %738 = vmatprep.subr.bf16.mxu0 %v615
        %739 = vmatpush1.bf16.msra.mxu0 %v614
        %740 = vmatprep.subr.bf16.mxu0 %v619
        %741 = vmatpush1.bf16.msra.mxu0 %v618
        %742 = vmatprep.subr.bf16.mxu0 %v623
        %743 = vmatpush1.bf16.msra.mxu0 %v622
        %744 = vmatprep.subr.bf16.mxu0 %v627
        %745 = vmatpush1.bf16.msra.mxu0 %v626
        %746 = vmatprep.subr.bf16.mxu0 %v631
        %747 = vmatpush1.bf16.msra.mxu0 %v630
        %748 = vmatprep.subr.bf16.mxu0 %v635
        %749 = vmatpush1.bf16.msra.mxu0 %v634
        %750 = vmatprep.subr.bf16.mxu0 %v639
        %751 = vmatpush1.bf16.msra.mxu0 %v638
        %752 = vmatprep.subr.bf16.mxu0 %v643
        %753 = vmatpush1.bf16.msra.mxu0 %v642
        %754 = vmatprep.subr.bf16.mxu0 %v647
        %755 = vmatpush1.bf16.msra.mxu0 %v646
        %756 = vmatprep.subr.bf16.mxu0 %v651
        %757 = vmatpush1.bf16.msra.mxu0 %v650
        %758 = vmatprep.subr.bf16.mxu0 %v655
        %759 = vmatpush1.bf16.msra.mxu0 %v654
        %760 = vmatprep.subr.bf16.mxu0 %v659
        %761 = vmatpush1.bf16.msra.mxu0 %v658
        %762 = vmatprep.subr.bf16.mxu0 %v663
        %763 = vmatpush1.bf16.msra.mxu0 %v662
        %764 = vmatprep.subr.bf16.mxu0 %v667
        %765 = vmatpush1.bf16.msra.mxu0 %v666
        %766 = vmatprep.mubr.bf16.mxu0 %v411
        %767 = vmatmul.mubr.bf16.gmra.mrb[0].mxu0 %v410
        %v768 = vpop.f32.mrb[0].mxu0
        %v769 = vadd.f32 %v390, %v768
        %v770 = vpop.f32.mrb[0].mxu0
        %v771 = vadd.f32 %v394, %v770
        %v772 = vpop.f32.mrb[0].mxu0
        %v773 = vpop.f32.mrb[0].mxu0
        %774 = vdwg.mxu0
        %775 = vmatprep.subr.bf16.mxu0 %v609
        %776 = vmatpush1.bf16.msra.mxu0 %v608
        %777 = vmatprep.subr.bf16.mxu0 %v613
        %778 = vmatpush1.bf16.msra.mxu0 %v612
        %779 = vmatprep.subr.bf16.mxu0 %v617
        %780 = vmatpush1.bf16.msra.mxu0 %v616
        %781 = vmatprep.subr.bf16.mxu0 %v621
        %782 = vmatpush1.bf16.msra.mxu0 %v620
        %783 = vmatprep.subr.bf16.mxu0 %v625
        %784 = vmatpush1.bf16.msra.mxu0 %v624
        %785 = vmatprep.subr.bf16.mxu0 %v629
        %786 = vmatpush1.bf16.msra.mxu0 %v628
        %787 = vmatprep.subr.bf16.mxu0 %v633
        %788 = vmatpush1.bf16.msra.mxu0 %v632
        %789 = vmatprep.subr.bf16.mxu0 %v637
        %790 = vmatpush1.bf16.msra.mxu0 %v636
        %791 = vmatprep.subr.bf16.mxu0 %v641
        %792 = vmatpush1.bf16.msra.mxu0 %v640
        %793 = vmatprep.subr.bf16.mxu0 %v645
        %794 = vmatpush1.bf16.msra.mxu0 %v644
        %795 = vmatprep.subr.bf16.mxu0 %v649
        %796 = vmatpush1.bf16.msra.mxu0 %v648
        %797 = vmatprep.subr.bf16.mxu0 %v653
        %798 = vmatpush1.bf16.msra.mxu0 %v652
        %799 = vmatprep.subr.bf16.mxu0 %v657
        %800 = vmatpush1.bf16.msra.mxu0 %v656
        %801 = vmatprep.subr.bf16.mxu0 %v661
        %802 = vmatpush1.bf16.msra.mxu0 %v660
        %803 = vmatprep.subr.bf16.mxu0 %v665
        %804 = vmatpush1.bf16.msra.mxu0 %v664
        %805 = vmatprep.subr.bf16.mxu0 %v669
        %806 = vmatpush1.bf16.msra.mxu0 %v668
        %807 = vmatprep.mubr.bf16.mxu0 %v411
        %808 = vmatmul.mubr.bf16.gmra.mrb[0].mxu0 %v410
        %v809 = vpop.f32.mrb[0].mxu0
        %v810 = vadd.f32 %v398, %v809
        %v811 = vpop.f32.mrb[0].mxu0
        %v812 = vadd.f32 %v402, %v811
        %v813 = vpop.f32.mrb[0].mxu0
        %v814 = vpop.f32.mrb[0].mxu0
        %815 = vdwg.mxu0
        %v816 = vmax.f32 %v769, 0.0
        %v817 = vmax.f32 %v771, 0.0
        %v818 = vmax.f32 %v810, 0.0
        %v819 = vmax.f32 %v812, 0.0
        %v820 = vpack.c.bf16 %v816, %v816
        %v821 = vpack.c.bf16 %v817, %v817
        %v822 = vpack.c.bf16 %v818, %v818
        %v823 = vpack.c.bf16 %v819, %v819
        %v824 = vld [vmem:[#allocation8] sm:$0xff]
        %v825 = vld [vmem:[#allocation8 + $0x8] sm:$0xff]
        %v826 = vld [vmem:[#allocation8 + $0x10] sm:$0xff]
        %v827 = vld [vmem:[#allocation8 + $0x18] sm:$0xff]
        %v828 = vld [vmem:[#allocation8 + $0x20] sm:$0xff]
        %v829 = vld [vmem:[#allocation8 + $0x28] sm:$0xff]
        %v830 = vld [vmem:[#allocation8 + $0x30] sm:$0xff]
        %v831 = vld [vmem:[#allocation8 + $0x38] sm:$0xff]
        %v832 = vld [vmem:[#allocation8 + $0x40] sm:$0xff]
        %v833 = vld [vmem:[#allocation8 + $0x48] sm:$0xff]
        %v834 = vld [vmem:[#allocation8 + $0x50] sm:$0xff]
        %v835 = vld [vmem:[#allocation8 + $0x58] sm:$0xff]
        %v836 = vld [vmem:[#allocation8 + $0x60] sm:$0xff]
        %v837 = vld [vmem:[#allocation8 + $0x68] sm:$0xff]
        %v838 = vld [vmem:[#allocation8 + $0x70] sm:$0xff]
        %v839 = vld [vmem:[#allocation8 + $0x78] sm:$0xff]
        %v840 = vld [vmem:[#allocation8 + $0x80] sm:$0xff]
        %v841 = vld [vmem:[#allocation8 + $0x88] sm:$0xff]
        %v842 = vld [vmem:[#allocation8 + $0x90] sm:$0xff]
        %v843 = vld [vmem:[#allocation8 + $0x98] sm:$0xff]
        %v844 = vld [vmem:[#allocation8 + $0xa0] sm:$0xff]
        %v845 = vld [vmem:[#allocation8 + $0xa8] sm:$0xff]
        %v846 = vld [vmem:[#allocation8 + $0xb0] sm:$0xff]
        %v847 = vld [vmem:[#allocation8 + $0xb8] sm:$0xff]
        %v848 = vld [vmem:[#allocation8 + $0xc0] sm:$0xff]
        %v849 = vld [vmem:[#allocation8 + $0xc8] sm:$0xff]
        %v850 = vld [vmem:[#allocation8 + $0xd0] sm:$0xff]
        %v851 = vld [vmem:[#allocation8 + $0xd8] sm:$0xff]
        %v852 = vld [vmem:[#allocation8 + $0xe0] sm:$0xff]
        %v853 = vld [vmem:[#allocation8 + $0xe8] sm:$0xff]
        %v854 = vld [vmem:[#allocation8 + $0xf0] sm:$0xff]
        %v855 = vld [vmem:[#allocation8 + $0xf8] sm:$0xff]
        %v856 = vld [vmem:[#allocation8 + $0x100] sm:$0xff]
        %v857 = vld [vmem:[#allocation8 + $0x108] sm:$0xff]
        %v858 = vld [vmem:[#allocation8 + $0x110] sm:$0xff]
        %v859 = vld [vmem:[#allocation8 + $0x118] sm:$0xff]
        %v860 = vld [vmem:[#allocation8 + $0x120] sm:$0xff]
        %v861 = vld [vmem:[#allocation8 + $0x128] sm:$0xff]
        %v862 = vld [vmem:[#allocation8 + $0x130] sm:$0xff]
        %v863 = vld [vmem:[#allocation8 + $0x138] sm:$0xff]
        %v864 = vld [vmem:[#allocation8 + $0x140] sm:$0xff]
        %v865 = vld [vmem:[#allocation8 + $0x148] sm:$0xff]
        %v866 = vld [vmem:[#allocation8 + $0x150] sm:$0xff]
        %v867 = vld [vmem:[#allocation8 + $0x158] sm:$0xff]
        %v868 = vld [vmem:[#allocation8 + $0x160] sm:$0xff]
        %v869 = vld [vmem:[#allocation8 + $0x168] sm:$0xff]
        %v870 = vld [vmem:[#allocation8 + $0x170] sm:$0xff]
        %v871 = vld [vmem:[#allocation8 + $0x178] sm:$0xff]
        %v872 = vld [vmem:[#allocation8 + $0x180] sm:$0xff]
        %v873 = vld [vmem:[#allocation8 + $0x188] sm:$0xff]
        %v874 = vld [vmem:[#allocation8 + $0x190] sm:$0xff]
        %v875 = vld [vmem:[#allocation8 + $0x198] sm:$0xff]
        %v876 = vld [vmem:[#allocation8 + $0x1a0] sm:$0xff]
        %v877 = vld [vmem:[#allocation8 + $0x1a8] sm:$0xff]
        %v878 = vld [vmem:[#allocation8 + $0x1b0] sm:$0xff]
        %v879 = vld [vmem:[#allocation8 + $0x1b8] sm:$0xff]
        %v880 = vld [vmem:[#allocation8 + $0x1c0] sm:$0xff]
        %v881 = vld [vmem:[#allocation8 + $0x1c8] sm:$0xff]
        %v882 = vld [vmem:[#allocation8 + $0x1d0] sm:$0xff]
        %v883 = vld [vmem:[#allocation8 + $0x1d8] sm:$0xff]
        %v884 = vld [vmem:[#allocation8 + $0x1e0] sm:$0xff]
        %v885 = vld [vmem:[#allocation8 + $0x1e8] sm:$0xff]
        %v886 = vld [vmem:[#allocation8 + $0x1f0] sm:$0xff]
        %v887 = vld [vmem:[#allocation8 + $0x1f8] sm:$0xff]
        %v952 = vunpack.c.l.b16 %v824
        %v953 = vunpack.c.h.b16 %v824
        %v954 = vunpack.c.l.b16 %v825
        %v955 = vunpack.c.h.b16 %v825
        %v956 = vunpack.c.l.b16 %v826
        %v957 = vunpack.c.h.b16 %v826
        %v958 = vunpack.c.l.b16 %v827
        %v959 = vunpack.c.h.b16 %v827
        %v960 = vunpack.c.l.b16 %v828
        %v961 = vunpack.c.h.b16 %v828
        %v962 = vunpack.c.l.b16 %v829
        %v963 = vunpack.c.h.b16 %v829
        %v964 = vunpack.c.l.b16 %v830
        %v965 = vunpack.c.h.b16 %v830
        %v966 = vunpack.c.l.b16 %v831
        %v967 = vunpack.c.h.b16 %v831
        %v968 = vunpack.c.l.b16 %v832
        %v969 = vunpack.c.h.b16 %v832
        %v970 = vunpack.c.l.b16 %v833
        %v971 = vunpack.c.h.b16 %v833
        %v972 = vunpack.c.l.b16 %v834
        %v973 = vunpack.c.h.b16 %v834
        %v974 = vunpack.c.l.b16 %v835
        %v975 = vunpack.c.h.b16 %v835
        %v976 = vunpack.c.l.b16 %v836
        %v977 = vunpack.c.h.b16 %v836
        %v978 = vunpack.c.l.b16 %v837
        %v979 = vunpack.c.h.b16 %v837
        %v980 = vunpack.c.l.b16 %v838
        %v981 = vunpack.c.h.b16 %v838
        %v982 = vunpack.c.l.b16 %v839
        %v983 = vunpack.c.h.b16 %v839
        %v984 = vunpack.c.l.b16 %v840
        %v985 = vunpack.c.h.b16 %v840
        %v986 = vunpack.c.l.b16 %v841
        %v987 = vunpack.c.h.b16 %v841
        %v988 = vunpack.c.l.b16 %v842
        %v989 = vunpack.c.h.b16 %v842
        %v990 = vunpack.c.l.b16 %v843
        %v991 = vunpack.c.h.b16 %v843
        %v992 = vunpack.c.l.b16 %v844
        %v993 = vunpack.c.h.b16 %v844
        %v994 = vunpack.c.l.b16 %v845
        %v995 = vunpack.c.h.b16 %v845
        %v996 = vunpack.c.l.b16 %v846
        %v997 = vunpack.c.h.b16 %v846
        %v998 = vunpack.c.l.b16 %v847
        %v999 = vunpack.c.h.b16 %v847
        %v1000 = vunpack.c.l.b16 %v848
        %v1001 = vunpack.c.h.b16 %v848
        %v1002 = vunpack.c.l.b16 %v849
        %v1003 = vunpack.c.h.b16 %v849
        %v1004 = vunpack.c.l.b16 %v850
        %v1005 = vunpack.c.h.b16 %v850
        %v1006 = vunpack.c.l.b16 %v851
        %v1007 = vunpack.c.h.b16 %v851
        %v1008 = vunpack.c.l.b16 %v852
        %v1009 = vunpack.c.h.b16 %v852
        %v1010 = vunpack.c.l.b16 %v853
        %v1011 = vunpack.c.h.b16 %v853
        %v1012 = vunpack.c.l.b16 %v854
        %v1013 = vunpack.c.h.b16 %v854
        %v1014 = vunpack.c.l.b16 %v855
        %v1015 = vunpack.c.h.b16 %v855
        %v1016 = vunpack.c.l.b16 %v856
        %v1017 = vunpack.c.h.b16 %v856
        %v1018 = vunpack.c.l.b16 %v857
        %v1019 = vunpack.c.h.b16 %v857
        %v1020 = vunpack.c.l.b16 %v858
        %v1021 = vunpack.c.h.b16 %v858
        %v1022 = vunpack.c.l.b16 %v859
        %v1023 = vunpack.c.h.b16 %v859
        %v1024 = vunpack.c.l.b16 %v860
        %v1025 = vunpack.c.h.b16 %v860
        %v1026 = vunpack.c.l.b16 %v861
        %v1027 = vunpack.c.h.b16 %v861
        %v1028 = vunpack.c.l.b16 %v862
        %v1029 = vunpack.c.h.b16 %v862
        %v1030 = vunpack.c.l.b16 %v863
        %v1031 = vunpack.c.h.b16 %v863
        %v1032 = vunpack.c.l.b16 %v864
        %v1033 = vunpack.c.h.b16 %v864
        %v1034 = vunpack.c.l.b16 %v865
        %v1035 = vunpack.c.h.b16 %v865
        %v1036 = vunpack.c.l.b16 %v866
        %v1037 = vunpack.c.h.b16 %v866
        %v1038 = vunpack.c.l.b16 %v867
        %v1039 = vunpack.c.h.b16 %v867
        %v1040 = vunpack.c.l.b16 %v868
        %v1041 = vunpack.c.h.b16 %v868
        %v1042 = vunpack.c.l.b16 %v869
        %v1043 = vunpack.c.h.b16 %v869
        %v1044 = vunpack.c.l.b16 %v870
        %v1045 = vunpack.c.h.b16 %v870
        %v1046 = vunpack.c.l.b16 %v871
        %v1047 = vunpack.c.h.b16 %v871
        %v1048 = vunpack.c.l.b16 %v872
        %v1049 = vunpack.c.h.b16 %v872
        %v1050 = vunpack.c.l.b16 %v873
        %v1051 = vunpack.c.h.b16 %v873
        %v1052 = vunpack.c.l.b16 %v874
        %v1053 = vunpack.c.h.b16 %v874
        %v1054 = vunpack.c.l.b16 %v875
        %v1055 = vunpack.c.h.b16 %v875
        %v1056 = vunpack.c.l.b16 %v876
        %v1057 = vunpack.c.h.b16 %v876
        %v1058 = vunpack.c.l.b16 %v877
        %v1059 = vunpack.c.h.b16 %v877
        %v1060 = vunpack.c.l.b16 %v878
        %v1061 = vunpack.c.h.b16 %v878
        %v1062 = vunpack.c.l.b16 %v879
        %v1063 = vunpack.c.h.b16 %v879
        %v1064 = vunpack.c.l.b16 %v880
        %v1065 = vunpack.c.h.b16 %v880
        %v1066 = vunpack.c.l.b16 %v881
        %v1067 = vunpack.c.h.b16 %v881
        %v1068 = vunpack.c.l.b16 %v882
        %v1069 = vunpack.c.h.b16 %v882
        %v1070 = vunpack.c.l.b16 %v883
        %v1071 = vunpack.c.h.b16 %v883
        %v1072 = vunpack.c.l.b16 %v884
        %v1073 = vunpack.c.h.b16 %v884
        %v1074 = vunpack.c.l.b16 %v885
        %v1075 = vunpack.c.h.b16 %v885
        %v1076 = vunpack.c.l.b16 %v886
        %v1077 = vunpack.c.h.b16 %v886
        %v1078 = vunpack.c.l.b16 %v887
        %v1079 = vunpack.c.h.b16 %v887
        %v1080 = vpack.c.b16 %v954, %v952
        %v1081 = vpack.c.b16 %v955, %v953
        %v1082 = vpack.c.b16 %v958, %v956
        %v1083 = vpack.c.b16 %v959, %v957
        %v1084 = vpack.c.b16 %v962, %v960
        %v1085 = vpack.c.b16 %v963, %v961
        %v1086 = vpack.c.b16 %v966, %v964
        %v1087 = vpack.c.b16 %v967, %v965
        %v1088 = vpack.c.b16 %v970, %v968
        %v1089 = vpack.c.b16 %v971, %v969
        %v1090 = vpack.c.b16 %v974, %v972
        %v1091 = vpack.c.b16 %v975, %v973
        %v1092 = vpack.c.b16 %v978, %v976
        %v1093 = vpack.c.b16 %v979, %v977
        %v1094 = vpack.c.b16 %v982, %v980
        %v1095 = vpack.c.b16 %v983, %v981
        %v1096 = vpack.c.b16 %v986, %v984
        %v1097 = vpack.c.b16 %v987, %v985
        %v1098 = vpack.c.b16 %v990, %v988
        %v1099 = vpack.c.b16 %v991, %v989
        %v1100 = vpack.c.b16 %v994, %v992
        %v1101 = vpack.c.b16 %v995, %v993
        %v1102 = vpack.c.b16 %v998, %v996
        %v1103 = vpack.c.b16 %v999, %v997
        %v1104 = vpack.c.b16 %v1002, %v1000
        %v1105 = vpack.c.b16 %v1003, %v1001
        %v1106 = vpack.c.b16 %v1006, %v1004
        %v1107 = vpack.c.b16 %v1007, %v1005
        %v1108 = vpack.c.b16 %v1010, %v1008
        %v1109 = vpack.c.b16 %v1011, %v1009
        %v1110 = vpack.c.b16 %v1014, %v1012
        %v1111 = vpack.c.b16 %v1015, %v1013
        %v1112 = vpack.c.b16 %v1018, %v1016
        %v1113 = vpack.c.b16 %v1019, %v1017
        %v1114 = vpack.c.b16 %v1022, %v1020
        %v1115 = vpack.c.b16 %v1023, %v1021
        %v1116 = vpack.c.b16 %v1026, %v1024
        %v1117 = vpack.c.b16 %v1027, %v1025
        %v1118 = vpack.c.b16 %v1030, %v1028
        %v1119 = vpack.c.b16 %v1031, %v1029
        %v1120 = vpack.c.b16 %v1034, %v1032
        %v1121 = vpack.c.b16 %v1035, %v1033
        %v1122 = vpack.c.b16 %v1038, %v1036
        %v1123 = vpack.c.b16 %v1039, %v1037
        %v1124 = vpack.c.b16 %v1042, %v1040
        %v1125 = vpack.c.b16 %v1043, %v1041
        %v1126 = vpack.c.b16 %v1046, %v1044
        %v1127 = vpack.c.b16 %v1047, %v1045
        %v1128 = vpack.c.b16 %v1050, %v1048
        %v1129 = vpack.c.b16 %v1051, %v1049
        %v1130 = vpack.c.b16 %v1054, %v1052
        %v1131 = vpack.c.b16 %v1055, %v1053
        %v1132 = vpack.c.b16 %v1058, %v1056
        %v1133 = vpack.c.b16 %v1059, %v1057
        %v1134 = vpack.c.b16 %v1062, %v1060
        %v1135 = vpack.c.b16 %v1063, %v1061
        %v1136 = vpack.c.b16 %v1066, %v1064
        %v1137 = vpack.c.b16 %v1067, %v1065
        %v1138 = vpack.c.b16 %v1070, %v1068
        %v1139 = vpack.c.b16 %v1071, %v1069
        %v1140 = vpack.c.b16 %v1074, %v1072
        %v1141 = vpack.c.b16 %v1075, %v1073
        %v1142 = vpack.c.b16 %v1078, %v1076
        %v1143 = vpack.c.b16 %v1079, %v1077
        %1208 = vmatprep.subr.bf16.mxu0 %v1081
        %1209 = vmatpush1.bf16.msra.mxu0 %v1080
        %1210 = vmatprep.subr.bf16.mxu0 %v1083
        %1211 = vmatpush1.bf16.msra.mxu0 %v1082
        %1212 = vmatprep.subr.bf16.mxu0 %v1085
        %1213 = vmatpush1.bf16.msra.mxu0 %v1084
        %1214 = vmatprep.subr.bf16.mxu0 %v1087
        %1215 = vmatpush1.bf16.msra.mxu0 %v1086
        %1216 = vmatprep.subr.bf16.mxu0 %v1089
        %1217 = vmatpush1.bf16.msra.mxu0 %v1088
        %1218 = vmatprep.subr.bf16.mxu0 %v1091
        %1219 = vmatpush1.bf16.msra.mxu0 %v1090
        %1220 = vmatprep.subr.bf16.mxu0 %v1093
        %1221 = vmatpush1.bf16.msra.mxu0 %v1092
        %1222 = vmatprep.subr.bf16.mxu0 %v1095
        %1223 = vmatpush1.bf16.msra.mxu0 %v1094
        %1224 = vmatprep.subr.bf16.mxu0 %v1097
        %1225 = vmatpush1.bf16.msra.mxu0 %v1096
        %1226 = vmatprep.subr.bf16.mxu0 %v1099
        %1227 = vmatpush1.bf16.msra.mxu0 %v1098
        %1228 = vmatprep.subr.bf16.mxu0 %v1101
        %1229 = vmatpush1.bf16.msra.mxu0 %v1100
        %1230 = vmatprep.subr.bf16.mxu0 %v1103
        %1231 = vmatpush1.bf16.msra.mxu0 %v1102
        %1232 = vmatprep.subr.bf16.mxu0 %v1105
        %1233 = vmatpush1.bf16.msra.mxu0 %v1104
        %1234 = vmatprep.subr.bf16.mxu0 %v1107
        %1235 = vmatpush1.bf16.msra.mxu0 %v1106
        %1236 = vmatprep.subr.bf16.mxu0 %v1109
        %1237 = vmatpush1.bf16.msra.mxu0 %v1108
        %1238 = vmatprep.subr.bf16.mxu0 %v1111
        %1239 = vmatpush1.bf16.msra.mxu0 %v1110
        %1240 = vmatprep.mubr.bf16.mxu0 %v821
        %1241 = vmatmul.mubr.bf16.gmra.mrb[0].mxu0 %v820
        %v1242 = vpop.f32.mrb[0].mxu0
        %v1243 = vadd.f32 0.0, %v1242
        %v1244 = vpop.f32.mrb[0].mxu0
        %v1245 = vadd.f32 0.0, %v1244
        %v1246 = vpop.f32.mrb[0].mxu0
        %v1247 = vpop.f32.mrb[0].mxu0
        %1248 = vdwg.mxu0
        %1249 = vmatprep.subr.bf16.mxu0 %v1113
        %1250 = vmatpush1.bf16.msra.mxu0 %v1112
        %1251 = vmatprep.subr.bf16.mxu0 %v1115
        %1252 = vmatpush1.bf16.msra.mxu0 %v1114
        %1253 = vmatprep.subr.bf16.mxu0 %v1117
        %1254 = vmatpush1.bf16.msra.mxu0 %v1116
        %1255 = vmatprep.subr.bf16.mxu0 %v1119
        %1256 = vmatpush1.bf16.msra.mxu0 %v1118
        %1257 = vmatprep.subr.bf16.mxu0 %v1121
        %1258 = vmatpush1.bf16.msra.mxu0 %v1120
        %1259 = vmatprep.subr.bf16.mxu0 %v1123
        %1260 = vmatpush1.bf16.msra.mxu0 %v1122
        %1261 = vmatprep.subr.bf16.mxu0 %v1125
        %1262 = vmatpush1.bf16.msra.mxu0 %v1124
        %1263 = vmatprep.subr.bf16.mxu0 %v1127
        %1264 = vmatpush1.bf16.msra.mxu0 %v1126
        %1265 = vmatprep.subr.bf16.mxu0 %v1129
        %1266 = vmatpush1.bf16.msra.mxu0 %v1128
        %1267 = vmatprep.subr.bf16.mxu0 %v1131
        %1268 = vmatpush1.bf16.msra.mxu0 %v1130
        %1269 = vmatprep.subr.bf16.mxu0 %v1133
        %1270 = vmatpush1.bf16.msra.mxu0 %v1132
        %1271 = vmatprep.subr.bf16.mxu0 %v1135
        %1272 = vmatpush1.bf16.msra.mxu0 %v1134
        %1273 = vmatprep.subr.bf16.mxu0 %v1137
        %1274 = vmatpush1.bf16.msra.mxu0 %v1136
        %1275 = vmatprep.subr.bf16.mxu0 %v1139
        %1276 = vmatpush1.bf16.msra.mxu0 %v1138
        %1277 = vmatprep.subr.bf16.mxu0 %v1141
        %1278 = vmatpush1.bf16.msra.mxu0 %v1140
        %1279 = vmatprep.subr.bf16.mxu0 %v1143
        %1280 = vmatpush1.bf16.msra.mxu0 %v1142
        %1281 = vmatprep.mubr.bf16.mxu0 %v823
        %1282 = vmatmul.mubr.bf16.gmra.mrb[0].mxu0 %v822
        %v1283 = vpop.f32.mrb[0].mxu0
        %v1284 = vadd.f32 %v1243, %v1283
        %v1285 = vpop.f32.mrb[0].mxu0
        %v1286 = vadd.f32 %v1245, %v1285
        %v1287 = vpop.f32.mrb[0].mxu0
        %v1288 = vpop.f32.mrb[0].mxu0
        %1289 = vdwg.mxu0
        %p1290 = scmp.eq.s32.totalorder %s28, 0
        // Predicated region
        $region53: #{tpu_custom_call.1} parent=39 // pred_check
          %p1291 = pneg %p1290
        $region54: #{tpu_custom_call.1} parent=39 // pred_check_branch
          %1293 = sbr.rel (%p1291) target = $region56
        $region55: #{tpu_custom_call.1} parent=39 // pred_region
          %v1294 = vld [vmem:[%s4] sm:$0x3]
          %v1296 = vlaneseq
          %v1297 = vshrl.u32 %v1296, 7
          %v1298 = vsub.s32 0, %v1297
          %v1299 = vrot.slane %v1294, %v1298
          %v1300 = vlaneseq
          %v1301 = vshrl.u32 %v1300, 7
          %v1302 = vsub.s32 1, %v1301
          %v1303 = vrot.slane %v1294, %v1302
          %v1306 = vadd.f32 %v1284, %v1299
          %v1307 = vadd.f32 %v1286, %v1303
          %1308 = vst [vmem:[%s312] sm:$0xff] %v1306
          %1309 = vst [vmem:[%s312 + $0x8] sm:$0xff] %v1307
          %p1310 = scmp.lt.s32.totalorder %s28, 0
          // Predicated region
          $region57: #{tpu_custom_call.1} parent=55 // pred_check
            %p1311 = pneg %p1310
          $region58: #{tpu_custom_call.1} parent=55 // pred_check_branch
            %1313 = sbr.rel (%p1311) target = $region60
          $region59: #{tpu_custom_call.1} parent=55 // pred_region
            %1314 = vst [vmem:[#allocation2] sm:$0xff] %v1306
            %1315 = vst [vmem:[#allocation2 + $0x8] sm:$0xff] %v1307
          $region60: #{tpu_custom_call.1} parent=55 // pred_fallthru
            _
        $region56: #{tpu_custom_call.1} parent=39 // pred_fallthru
          _
        %p1316 = scmp.gt.s32.totalorder %s28, 0
        // Predicated region
        $region61: #{tpu_custom_call.1} parent=39 // pred_check
          %p1317 = pneg %p1316
        $region62: #{tpu_custom_call.1} parent=39 // pred_check_branch
          %1319 = sbr.rel (%p1317) target = $region64
        $region63: #{tpu_custom_call.1} parent=39 // pred_region
          %v1320 = vld [vmem:[#allocation2] sm:$0xff]
          %v1321 = vld [vmem:[#allocation2 + $0x8] sm:$0xff]
          %v1322 = vadd.f32 %v1320, %v1284
          %v1323 = vadd.f32 %v1321, %v1286
          // Predicated region
          $region65: #{tpu_custom_call.1} parent=63 // pred_check
            %p1324 = pneg %p1290
          $region66: #{tpu_custom_call.1} parent=63 // pred_check_branch
            %1326 = sbr.rel (%p1324) target = $region68
          $region67: #{tpu_custom_call.1} parent=63 // pred_region
            %1327 = vst [vmem:[%s312] sm:$0xff] %v1322
            %1328 = vst [vmem:[%s312 + $0x8] sm:$0xff] %v1323
          $region68: #{tpu_custom_call.1} parent=63 // pred_fallthru
            _
          %p1329 = scmp.lt.s32.totalorder %s28, 0
          // Predicated region
          $region69: #{tpu_custom_call.1} parent=63 // pred_check
            %p1330 = pneg %p1329
          $region70: #{tpu_custom_call.1} parent=63 // pred_check_branch
            %1332 = sbr.rel (%p1330) target = $region72
          $region71: #{tpu_custom_call.1} parent=63 // pred_region
            %1333 = vst [vmem:[#allocation2] sm:$0xff] %v1322
            %1334 = vst [vmem:[#allocation2 + $0x8] sm:$0xff] %v1323
          $region72: #{tpu_custom_call.1} parent=63 // pred_fallthru
            _
        $region64: #{tpu_custom_call.1} parent=39 // pred_fallthru
          _
        %s1335 = sand.u32 %s168, 1
        %s1336 = scalar_lea.sflag [#allocation5], %s1335
        %s1337 = sand.u32 %s168, 1
        %s1338 = smul.addr %s1337, 16
        %s1339 = scalar_lea.vmem [#allocation9], %s1338
        // Predicated region
        $region73: #{tpu_custom_call.1} parent=39 // pred_check
          %p1340 = pneg %p178
        $region74: #{tpu_custom_call.1} parent=39 // pred_check_branch
          %1342 = sbr.rel (%p1340) target = $region76
        $region75: #{tpu_custom_call.1} parent=39 // pred_region
          %s1344 = ssub.s32 256, 256
          %1345 = vsyncadd %s1336, %s1344
          %s1346 = smul.addr %s27, 2
          %s1347 = smul.addr %s1346, 128
          %s1348 = scalar_lea.hbm %s5, %s1347
          %s1350 = sshll.u32 %s1339, 4
          %s1351 = int_to_ptr.vmem [resolvable:$true] %s1350
          %1353 = dma.vmem_to_hbm [thread:$0]  %s1351, 256, %s1348, %s1336
        $region76: #{tpu_custom_call.1} parent=39 // pred_fallthru
          _
      $region40: #{tpu_custom_call.1} parent=5 // pred_fallthru
        _
      %p1354 = scmp.le.s32.totalorder 2, %s18
      // Predicated region
      $region77: #{tpu_custom_call.1} parent=5 // pred_check
        %p1355 = pneg %p1354
      $region78: #{tpu_custom_call.1} parent=5 // pred_check_branch
        %1357 = sbr.rel (%p1355) target = $region80
      $region79: #{tpu_custom_call.1} parent=5 // pred_region
        %s1358 = ssub.s32 %s18, 2
        // Predicated region
        $region81: #{tpu_custom_call.1} parent=79 // pred_check
          %p1359 = pneg %p184
        $region82: #{tpu_custom_call.1} parent=79 // pred_check_branch
          %1361 = sbr.rel (%p1359) target = $region84
        $region83: #{tpu_custom_call.1} parent=79 // pred_region
          %s1362 = sand.u32 %s169, 1
          %s1363 = scalar_lea.sflag [#allocation5], %s1362
          %s1364 = sand.u32 %s169, 1
          %s1365 = smul.addr %s1364, 16
          %s1366 = scalar_lea.vmem [#allocation9], %s1365
          %1367 = dma.done %s1363, 256
        $region84: #{tpu_custom_call.1} parent=79 // pred_fallthru
          _
      $region80: #{tpu_custom_call.1} parent=5 // pred_fallthru
        _
    $region6: #{tpu_custom_call.1} parent=1 // loop_footer
      %s22 = sadd.s32 1, %s18
    $region7: #{tpu_custom_call.1} parent=1 // loop_footer_branch
      %17 = sbr.rel target = $region3
    $region8: #{tpu_custom_call.1} parent=1 // loop_exit
      _
    %1368 = vsyncpa [#allocation4], 1
    %s1369 = scalar_lea.sflag [#allocation4], 1
    %1370 = vsyncpa %s1369, 1
    %1371 = vsyncpa [#allocation7], 1
    %1372 = vsyncpa [#allocation5], 1
    %s1373 = scalar_lea.sflag [#allocation5], 1
    %1374 = vsyncpa %s1373, 1

</llo_original>
